<compile_context>
chip_gen: v5e
topology: v5e:2x2
jax: 0.10.0
libtpu: 0.0.40
codegen_flags: <defaults>
</compile_context>

<pallas_src>
import functools

import jax
import jax.numpy as jnp
from jax.experimental import pallas as pl
from jax.experimental.pallas import tpu as pltpu


def _round_up(x: int, m: int) -> int:
    return (x + m - 1) // m * m


def decoder_kernel(x_ref, w1_ref, b1_ref, w2_ref, b2_ref, o_ref, *, compute_dtype):
    # First layer: (TB, Din) @ (Din, H) on the MXU, f32 accumulate.
    x = x_ref[...].astype(compute_dtype)
    w1 = w1_ref[...].astype(compute_dtype)
    h = jnp.dot(x, w1, preferred_element_type=jnp.float32)        # (TB, H) f32
    # Bias + tanh in f32 (EUP); padded hidden columns are tanh(0) = 0.
    h = jnp.tanh(h + b1_ref[...])
    # Second layer: (TB, H) @ (H, Dout) on the MXU, f32 accumulate.
    w2 = w2_ref[...].astype(compute_dtype)
    y = jnp.dot(h.astype(compute_dtype), w2, preferred_element_type=jnp.float32)
    o_ref[...] = (y + b2_ref[...]).astype(o_ref.dtype)


def decoder_forward(x, w1, b1, w2, b2, *, use_bf16=False):
    """y = tanh(x @ w1 + b1) @ w2 + b2  (weights stored as (in, out))."""
    B, D_in = x.shape
    H = w1.shape[1]
    D_out = w2.shape[1]

    # --- pad feature dims to lane multiples, batch to sublane/tile multiples ---
    D_in_p = _round_up(D_in, 128)
    H_p = _round_up(H, 128)
    D_out_p = _round_up(D_out, 128)

    TB = min(512, _round_up(B, 8))          # batch tile (rows per grid step)
    B_p = _round_up(B, TB)
    grid = (B_p // TB,)

    f32 = jnp.float32
    x_p = jnp.zeros((B_p, D_in_p), f32).at[:B, :D_in].set(x.astype(f32))
    w1_p = jnp.zeros((D_in_p, H_p), f32).at[:D_in, :H].set(w1.astype(f32))
    b1_p = jnp.zeros((1, H_p), f32).at[:, :H].set(b1.astype(f32))
    w2_p = jnp.zeros((H_p, D_out_p), f32).at[:H, :D_out].set(w2.astype(f32))
    b2_p = jnp.zeros((1, D_out_p), f32).at[:, :D_out].set(b2.astype(f32))

    compute_dtype = jnp.bfloat16 if use_bf16 else jnp.float32

    flops = 2 * B_p * (D_in_p * H_p + H_p * D_out_p)
    bytes_accessed = 4 * (
        B_p * D_in_p + D_in_p * H_p + H_p + H_p * D_out_p + D_out_p + B_p * D_out_p
    )
    cost = pl.CostEstimate(
        flops=flops, transcendentals=B_p * H_p, bytes_accessed=bytes_accessed
    )

    out_p = pl.pallas_call(
        functools.partial(decoder_kernel, compute_dtype=compute_dtype),
        out_shape=jax.ShapeDtypeStruct((B_p, D_out_p), jnp.float32),
        grid_spec=pltpu.PrefetchScalarGridSpec(
            num_scalar_prefetch=0,
            grid=grid,
            in_specs=[
                pl.BlockSpec((TB, D_in_p), lambda i: (i, 0)),      # streamed per tile
                pl.BlockSpec((D_in_p, H_p), lambda i: (0, 0)),     # VMEM-resident
                pl.BlockSpec((1, H_p), lambda i: (0, 0)),          # VMEM-resident
                pl.BlockSpec((H_p, D_out_p), lambda i: (0, 0)),    # VMEM-resident
                pl.BlockSpec((1, D_out_p), lambda i: (0, 0)),      # VMEM-resident
            ],
            out_specs=pl.BlockSpec((TB, D_out_p), lambda i: (i, 0)),
        ),
        compiler_params=pltpu.CompilerParams(
            dimension_semantics=("parallel",),
        ),
        cost_estimate=cost,
    )(x_p, w1_p, b1_p, w2_p, b2_p)

    # Strip batch / lane padding.
    return out_p[:B, :D_out]


def init_decoder_params(key, input_size, hidden_size, output_size):
    # Deterministic init mimicking nn.Linear's uniform(-1/sqrt(fan_in), 1/sqrt(fan_in)).
    k1, k2, k3, k4 = jax.random.split(key, 4)
    bound1 = 1.0 / jnp.sqrt(input_size)
    bound2 = 1.0 / jnp.sqrt(hidden_size)
    w1 = jax.random.uniform(k1, (input_size, hidden_size), jnp.float32, -bound1, bound1)
    b1 = jax.random.uniform(k2, (1, hidden_size), jnp.float32, -bound1, bound1)
    w2 = jax.random.uniform(k3, (hidden_size, output_size), jnp.float32, -bound2, bound2)
    b2 = jax.random.uniform(k4, (1, output_size), jnp.float32, -bound2, bound2)
    return w1, b1, w2, b2


if __name__ == "__main__":
    # Shapes implied by the module: data = (100, 1), hidden = 10, output = 1.
    batch = 100
    input_size = 1
    hidden_size = 10
    output_size = 1

    key = jax.random.PRNGKey(0)
    k_x, k_p = jax.random.split(key)
    x = jax.random.uniform(k_x, (batch, input_size), jnp.float32)
    w1, b1, w2, b2 = init_decoder_params(k_p, input_size, hidden_size, output_size)

    out = decoder_forward(x, w1, b1, w2, b2, use_bf16=False)
    out = jax.block_until_ready(out)

    # Reference check against plain JAX.
    ref = jnp.tanh(x @ w1 + b1) @ w2 + b2
    assert out.shape == (batch, output_size)
    assert jnp.allclose(out, ref, atol=1e-5), "mismatch vs reference"

    print("KERNEL_OK")
</pallas_src>

<mosaic_0001>
module attributes {stable_mosaic.version = 11 : i64} {
  func.func @decoder_kernel(%arg0: i32, %arg1: memref<104x128xf32, #tpu.memory_space<vmem>>, %arg2: memref<128x128xf32, #tpu.memory_space<vmem>>, %arg3: memref<1x128xf32, #tpu.memory_space<vmem>>, %arg4: memref<128x128xf32, #tpu.memory_space<vmem>>, %arg5: memref<1x128xf32, #tpu.memory_space<vmem>>, %arg6: memref<104x128xf32, #tpu.memory_space<vmem>>) attributes {dimension_semantics = [#tpu.dimension_semantics<parallel>], iteration_bounds = array<i64: 1>, scalar_prefetch = 0 : i64, scratch_operands = 0 : i64, tpu.core_type = #tpu.core_type<tc>, window_params = [{transform_indices = @transform_0, window_bounds = array<i64: 104, 128>}, {pipeline_mode = #tpu.pipeline_mode<synchronous>, transform_indices = @transform_1, window_bounds = array<i64: 128, 128>}, {pipeline_mode = #tpu.pipeline_mode<synchronous>, transform_indices = @transform_2, window_bounds = array<i64: 1, 128>}, {pipeline_mode = #tpu.pipeline_mode<synchronous>, transform_indices = @transform_3, window_bounds = array<i64: 128, 128>}, {pipeline_mode = #tpu.pipeline_mode<synchronous>, transform_indices = @transform_4, window_bounds = array<i64: 1, 128>}, {transform_indices = @transform_5, window_bounds = array<i64: 104, 128>}]} {
    %c0 = arith.constant 0 : index
    %c0_0 = arith.constant 0 : index
    %0 = vector.load %arg1[%c0, %c0_0] : memref<104x128xf32, #tpu.memory_space<vmem>>, vector<104x128xf32>
    %c0_1 = arith.constant 0 : index
    %c0_2 = arith.constant 0 : index
    %1 = vector.load %arg2[%c0_1, %c0_2] : memref<128x128xf32, #tpu.memory_space<vmem>>, vector<128x128xf32>
    %cst = arith.constant dense<0.000000e+00> : vector<104x128xf32>
    %2 = tpu.matmul %0, %1, %cst {dimension_numbers = #tpu.dot_dimension_numbers<[1], [0], [0], [1], [0, 0, 1, 1], [], []>} : vector<104x128xf32>, vector<128x128xf32>, vector<104x128xf32> -> vector<104x128xf32>
    %c0_3 = arith.constant 0 : index
    %c0_4 = arith.constant 0 : index
    %3 = vector.load %arg3[%c0_3, %c0_4] : memref<1x128xf32, #tpu.memory_space<vmem>>, vector<1x128xf32>
    %4 = vector.broadcast %3 : vector<1x128xf32> to vector<104x128xf32>
    %5 = arith.addf %2, %4 : vector<104x128xf32>
    %6 = math.tanh %5 : vector<104x128xf32>
    %c0_5 = arith.constant 0 : index
    %c0_6 = arith.constant 0 : index
    %7 = vector.load %arg4[%c0_5, %c0_6] : memref<128x128xf32, #tpu.memory_space<vmem>>, vector<128x128xf32>
    %cst_7 = arith.constant dense<0.000000e+00> : vector<104x128xf32>
    %8 = tpu.matmul %6, %7, %cst_7 {dimension_numbers = #tpu.dot_dimension_numbers<[1], [0], [0], [1], [0, 0, 1, 1], [], []>} : vector<104x128xf32>, vector<128x128xf32>, vector<104x128xf32> -> vector<104x128xf32>
    %c0_8 = arith.constant 0 : index
    %c0_9 = arith.constant 0 : index
    %9 = vector.load %arg5[%c0_8, %c0_9] : memref<1x128xf32, #tpu.memory_space<vmem>>, vector<1x128xf32>
    %10 = vector.broadcast %9 : vector<1x128xf32> to vector<104x128xf32>
    %11 = arith.addf %8, %10 : vector<104x128xf32>
    %c0_10 = arith.constant 0 : index
    %c0_11 = arith.constant 0 : index
    %12 = vector.load %arg6[%c0_10, %c0_11] : memref<104x128xf32, #tpu.memory_space<vmem>>, vector<104x128xf32>
    tpu.vector_store %arg6[%c0_10, %c0_11], %11 {strides = array<i32>} : memref<104x128xf32, #tpu.memory_space<vmem>>, vector<104x128xf32>,
    return
  }
  func.func @transform_0(%arg0: i32) -> (i32, i32) {
    %c0_i32 = arith.constant 0 : i32
    %c0_i32_0 = arith.constant 0 : i32
    return %arg0, %c0_i32 : i32, i32
  }
  func.func @transform_1(%arg0: i32) -> (i32, i32) {
    %c0_i32 = arith.constant 0 : i32
    %c0_i32_0 = arith.constant 0 : i32
    %c0_i32_1 = arith.constant 0 : i32
    return %c0_i32, %c0_i32_0 : i32, i32
  }
  func.func @transform_2(%arg0: i32) -> (i32, i32) {
    %c0_i32 = arith.constant 0 : i32
    %c0_i32_0 = arith.constant 0 : i32
    %c0_i32_1 = arith.constant 0 : i32
    return %c0_i32, %c0_i32_0 : i32, i32
  }
  func.func @transform_3(%arg0: i32) -> (i32, i32) {
    %c0_i32 = arith.constant 0 : i32
    %c0_i32_0 = arith.constant 0 : i32
    %c0_i32_1 = arith.constant 0 : i32
    return %c0_i32, %c0_i32_0 : i32, i32
  }
  func.func @transform_4(%arg0: i32) -> (i32, i32) {
    %c0_i32 = arith.constant 0 : i32
    %c0_i32_0 = arith.constant 0 : i32
    %c0_i32_1 = arith.constant 0 : i32
    return %c0_i32, %c0_i32_0 : i32, i32
  }
  func.func @transform_5(%arg0: i32) -> (i32, i32) {
    %c0_i32 = arith.constant 0 : i32
    %c0_i32_0 = arith.constant 0 : i32
    return %arg0, %c0_i32 : i32, i32
  }
}

</mosaic_0001>

<llo_original>
// kernel: tpu_custom_call.1
$region0: #{tpu_custom_call.1}
  #allocation0 [shape = 'u32[]', space=smem, size = 0x4, offset = 0x4, fixed_abs, tag = 'smem constant byte address 0x4 - core index']
  #allocation1 [shape = 'u32[72,128]{1,0:T(1,128)}', space=vmem, size = 0x9000, scoped, tag = 'internal scratch']
  %s0 = inlined_call_operand.hbm [shape: f32[104,128], index: 0, kind: input, shape index: {}]
  %s1 = inlined_call_operand.hbm [shape: f32[128,128], index: 1, kind: input, shape index: {}]
  %s2 = inlined_call_operand.vmem [shape: f32[1,128], index: 2, kind: input, shape index: {}]
  %s3 = inlined_call_operand.hbm [shape: f32[128,128], index: 3, kind: input, shape index: {}]
  %s4 = inlined_call_operand.vmem [shape: f32[1,128], index: 4, kind: input, shape index: {}]
  %s5 = inlined_call_operand.hbm [shape: f32[104,128], index: 5, kind: output, shape index: {}]
  %s6 = sld [smem:[#allocation0]]
  $region42: #{tpu_custom_call.1} parent=0
    _
  %s8 = ssub.s32 1, %s6
  %s9 = scalar_select 0, %s8, %s6
  $region1: #{tpu_custom_call.1} parent=0
    #allocation2 [shape = 'u8[53248]{0}', space=vmem, size = 0xd000, scoped, tag = 'input window, operand 0, single buffered']
    #allocation3 [shape = 's32[1]{0}', space=sflag, size = 0x4, scoped, tag = 'scoped memory for tpu_custom_call.1']
    #allocation4 [shape = 's32[1]{0}', space=sflag, size = 0x4, scoped, tag = 'scoped memory for tpu_custom_call.1']
    #allocation5 [shape = 'u8[65536]{0}', space=vmem, size = 0x10000, scoped, tag = 'input window, operand 1, single buffered']
    #allocation6 [shape = 's32[1]{0}', space=sflag, size = 0x4, scoped, tag = 'scoped memory for tpu_custom_call.1']
    #allocation7 [shape = 'u8[65536]{0}', space=vmem, size = 0x10000, scoped, tag = 'input window, operand 3, single buffered']
    #allocation8 [shape = 'u8[53248]{0}', space=vmem, size = 0xd000, scoped, tag = 'output window, operand 0, single buffered']
    %10 = vsyncpa [#allocation3], 0
    %11 = vsyncpa [#allocation6], 0
    %12 = vsyncpa [#allocation4], 0
    // Predicated region
    $region2: #{tpu_custom_call.1} parent=1 // pred_check
      _
    $region3: #{tpu_custom_call.1} parent=1 // pred_check_branch
      %14 = sbr.rel (0) target = $region5
    $region4: #{tpu_custom_call.1} parent=1 // pred_region
      %16 = vsyncadd [#allocation3], 0
      %s17 = sshll.u32 %s0, 4
      %s18 = int_to_ptr.hbm [resolvable:$true] %s17
      %s19 = sshll.u32 [#allocation2], 4
      %s20 = int_to_ptr.vmem [resolvable:$true] %s19
      %25 = dma.hbm_to_vmem [thread:$0]  %s18, 1664, %s20, [#allocation3], 128, 128, 8
    $region5: #{tpu_custom_call.1} parent=1 // pred_fallthru
      _
    // Predicated region
    $region6: #{tpu_custom_call.1} parent=1 // pred_check
      _
    $region7: #{tpu_custom_call.1} parent=1 // pred_check_branch
      %27 = sbr.rel (0) target = $region9
    $region8: #{tpu_custom_call.1} parent=1 // pred_region
      %29 = vsyncadd [#allocation6], 0
      %s30 = sshll.u32 %s1, 4
      %s31 = int_to_ptr.hbm [resolvable:$true] %s30
      %s32 = sshll.u32 [#allocation5], 4
      %s33 = int_to_ptr.vmem [resolvable:$true] %s32
      %38 = dma.hbm_to_vmem [thread:$0]  %s31, 2048, %s33, [#allocation6], 128, 128, 8
    $region9: #{tpu_custom_call.1} parent=1 // pred_fallthru
      _
    // Predicated region
    $region10: #{tpu_custom_call.1} parent=1 // pred_check
      _
    $region11: #{tpu_custom_call.1} parent=1 // pred_check_branch
      %40 = sbr.rel (0) target = $region13
    $region12: #{tpu_custom_call.1} parent=1 // pred_region
      _
    $region13: #{tpu_custom_call.1} parent=1 // pred_fallthru
      _
    // Predicated region
    $region14: #{tpu_custom_call.1} parent=1 // pred_check
      _
    $region15: #{tpu_custom_call.1} parent=1 // pred_check_branch
      %42 = sbr.rel (0) target = $region17
    $region16: #{tpu_custom_call.1} parent=1 // pred_region
      %44 = vsyncadd [#allocation6], 0
      %s45 = sshll.u32 %s3, 4
      %s46 = int_to_ptr.hbm [resolvable:$true] %s45
      %s47 = sshll.u32 [#allocation7], 4
      %s48 = int_to_ptr.vmem [resolvable:$true] %s47
      %53 = dma.hbm_to_vmem [thread:$0]  %s46, 2048, %s48, [#allocation6], 128, 128, 8
    $region17: #{tpu_custom_call.1} parent=1 // pred_fallthru
      _
    // Predicated region
    $region18: #{tpu_custom_call.1} parent=1 // pred_check
      _
    $region19: #{tpu_custom_call.1} parent=1 // pred_check_branch
      %55 = sbr.rel (0) target = $region21
    $region20: #{tpu_custom_call.1} parent=1 // pred_region
      _
    $region21: #{tpu_custom_call.1} parent=1 // pred_fallthru
      _
    // Predicated region
    $region22: #{tpu_custom_call.1} parent=1 // pred_check
      _
    $region23: #{tpu_custom_call.1} parent=1 // pred_check_branch
      %57 = sbr.rel (0) target = $region25
    $region24: #{tpu_custom_call.1} parent=1 // pred_region
      %59 = dma.done [#allocation3], 1664
    $region25: #{tpu_custom_call.1} parent=1 // pred_fallthru
      _
    // Predicated region
    $region26: #{tpu_custom_call.1} parent=1 // pred_check
      _
    $region27: #{tpu_custom_call.1} parent=1 // pred_check_branch
      %61 = sbr.rel (0) target = $region29
    $region28: #{tpu_custom_call.1} parent=1 // pred_region
      %63 = dma.done [#allocation6], 2048
    $region29: #{tpu_custom_call.1} parent=1 // pred_fallthru
      _
    // Predicated region
    $region30: #{tpu_custom_call.1} parent=1 // pred_check
      _
    $region31: #{tpu_custom_call.1} parent=1 // pred_check_branch
      %65 = sbr.rel (0) target = $region33
    $region32: #{tpu_custom_call.1} parent=1 // pred_region
      %67 = dma.done [#allocation6], 2048
    $region33: #{tpu_custom_call.1} parent=1 // pred_fallthru
      _
    %v68 = vld [vmem:[#allocation2] sm:$0xff]
    %v69 = vld [vmem:[#allocation2 + $0x8] sm:$0xff]
    %v70 = vld [vmem:[#allocation2 + $0x10] sm:$0xff]
    %v71 = vld [vmem:[#allocation2 + $0x18] sm:$0xff]
    %v72 = vld [vmem:[#allocation2 + $0x20] sm:$0xff]
    %v73 = vld [vmem:[#allocation2 + $0x28] sm:$0xff]
    %v74 = vld [vmem:[#allocation2 + $0x30] sm:$0xff]
    %v75 = vld [vmem:[#allocation2 + $0x38] sm:$0xff]
    %v76 = vld [vmem:[#allocation2 + $0x40] sm:$0xff]
    %v77 = vld [vmem:[#allocation2 + $0x48] sm:$0xff]
    %v78 = vld [vmem:[#allocation2 + $0x50] sm:$0xff]
    %v79 = vld [vmem:[#allocation2 + $0x58] sm:$0xff]
    %v80 = vld [vmem:[#allocation2 + $0x60] sm:$0xff]
    %v81 = vld [vmem:[#allocation5] sm:$0xff]
    %v82 = vld [vmem:[#allocation5 + $0x8] sm:$0xff]
    %v83 = vld [vmem:[#allocation5 + $0x10] sm:$0xff]
    %v84 = vld [vmem:[#allocation5 + $0x18] sm:$0xff]
    %v85 = vld [vmem:[#allocation5 + $0x20] sm:$0xff]
    %v86 = vld [vmem:[#allocation5 + $0x28] sm:$0xff]
    %v87 = vld [vmem:[#allocation5 + $0x30] sm:$0xff]
    %v88 = vld [vmem:[#allocation5 + $0x38] sm:$0xff]
    %v89 = vld [vmem:[#allocation5 + $0x40] sm:$0xff]
    %v90 = vld [vmem:[#allocation5 + $0x48] sm:$0xff]
    %v91 = vld [vmem:[#allocation5 + $0x50] sm:$0xff]
    %v92 = vld [vmem:[#allocation5 + $0x58] sm:$0xff]
    %v93 = vld [vmem:[#allocation5 + $0x60] sm:$0xff]
    %v94 = vld [vmem:[#allocation5 + $0x68] sm:$0xff]
    %v95 = vld [vmem:[#allocation5 + $0x70] sm:$0xff]
    %v96 = vld [vmem:[#allocation5 + $0x78] sm:$0xff]
    %v97 = vld [vmem:[%s2] sm:$0x1]
    %v99 = vperm.slane %v97, 0
    %101 = vmatpush.msra.mxu0 %v96
    %102 = vmatpush.msra.mxu0 %v95
    %103 = vmatpush.msra.mxu0 %v94
    %104 = vmatpush.msra.mxu0 %v93
    %105 = vmatpush.msra.mxu0 %v92
    %106 = vmatpush.msra.mxu0 %v91
    %107 = vmatpush.msra.mxu0 %v90
    %108 = vmatpush.msra.mxu0 %v89
    %109 = vmatpush.msra.mxu0 %v88
    %110 = vmatpush.msra.mxu0 %v87
    %111 = vmatpush.msra.mxu0 %v86
    %112 = vmatpush.msra.mxu0 %v85
    %113 = vmatpush.msra.mxu0 %v84
    %114 = vmatpush.msra.mxu0 %v83
    %115 = vmatpush.msra.mxu0 %v82
    %116 = vmatpush.msra.mxu0 %v81
    %117 = vmatmul.f32.gmra.mxu0 %v68
    %v118 = vpop.f32.mrf.mxu0
    %v119 = vadd.f32 %v99, %v118
    %120 = vmatmul.f32.gmra.mxu0 %v69
    %v121 = vpop.f32.mrf.mxu0
    %v122 = vadd.f32 %v99, %v121
    %123 = vmatmul.f32.gmra.mxu0 %v70
    %v124 = vpop.f32.mrf.mxu0
    %v125 = vadd.f32 %v99, %v124
    %126 = vmatmul.f32.gmra.mxu0 %v71
    %v127 = vpop.f32.mrf.mxu0
    %v128 = vadd.f32 %v99, %v127
    %129 = vmatmul.f32.gmra.mxu0 %v72
    %v130 = vpop.f32.mrf.mxu0
    %v131 = vadd.f32 %v99, %v130
    %132 = vmatmul.f32.gmra.mxu0 %v73
    %v133 = vpop.f32.mrf.mxu0
    %v134 = vadd.f32 %v99, %v133
    %135 = vmatmul.f32.gmra.mxu0 %v74
    %v136 = vpop.f32.mrf.mxu0
    %v137 = vadd.f32 %v99, %v136
    %138 = vmatmul.f32.gmra.mxu0 %v75
    %v139 = vpop.f32.mrf.mxu0
    %v140 = vadd.f32 %v99, %v139
    %141 = vmatmul.f32.gmra.mxu0 %v76
    %v142 = vpop.f32.mrf.mxu0
    %v143 = vadd.f32 %v99, %v142
    %144 = vmatmul.f32.gmra.mxu0 %v77
    %v145 = vpop.f32.mrf.mxu0
    %v146 = vadd.f32 %v99, %v145
    %147 = vmatmul.f32.gmra.mxu0 %v78
    %v148 = vpop.f32.mrf.mxu0
    %v149 = vadd.f32 %v99, %v148
    %150 = vmatmul.f32.gmra.mxu0 %v79
    %v151 = vpop.f32.mrf.mxu0
    %v152 = vadd.f32 %v99, %v151
    %153 = vmatmul.f32.gmra.mxu0 %v80
    %v154 = vpop.f32.mrf.mxu0
    %v155 = vadd.f32 %v99, %v154
    %156 = vdwg.mxu0
    %v157 = vtanh.pop %v119
    %v158 = vtanh.pop %v122
    %v159 = vtanh.pop %v125
    %v160 = vtanh.pop %v128
    %v161 = vtanh.pop %v131
    %v162 = vtanh.pop %v134
    %v163 = vtanh.pop %v137
    %v164 = vtanh.pop %v140
    %v165 = vtanh.pop %v143
    %v166 = vtanh.pop %v146
    %v167 = vtanh.pop %v149
    %v168 = vtanh.pop %v152
    %v169 = vtanh.pop %v155
    %v170 = vld [vmem:[#allocation7] sm:$0xff]
    %v171 = vld [vmem:[#allocation7 + $0x8] sm:$0xff]
    %v172 = vld [vmem:[#allocation7 + $0x10] sm:$0xff]
    %v173 = vld [vmem:[#allocation7 + $0x18] sm:$0xff]
    %v174 = vld [vmem:[#allocation7 + $0x20] sm:$0xff]
    %v175 = vld [vmem:[#allocation7 + $0x28] sm:$0xff]
    %v176 = vld [vmem:[#allocation7 + $0x30] sm:$0xff]
    %v177 = vld [vmem:[#allocation7 + $0x38] sm:$0xff]
    %v178 = vld [vmem:[#allocation7 + $0x40] sm:$0xff]
    %v179 = vld [vmem:[#allocation7 + $0x48] sm:$0xff]
    %v180 = vld [vmem:[#allocation7 + $0x50] sm:$0xff]
    %v181 = vld [vmem:[#allocation7 + $0x58] sm:$0xff]
    %v182 = vld [vmem:[#allocation7 + $0x60] sm:$0xff]
    %v183 = vld [vmem:[#allocation7 + $0x68] sm:$0xff]
    %v184 = vld [vmem:[#allocation7 + $0x70] sm:$0xff]
    %v185 = vld [vmem:[#allocation7 + $0x78] sm:$0xff]
    %v186 = vld [vmem:[%s4] sm:$0x1]
    %v188 = vperm.slane %v186, 0
    %190 = vmatpush.msra.mxu0 %v185
    %191 = vmatpush.msra.mxu0 %v184
    %192 = vmatpush.msra.mxu0 %v183
    %193 = vmatpush.msra.mxu0 %v182
    %194 = vmatpush.msra.mxu0 %v181
    %195 = vmatpush.msra.mxu0 %v180
    %196 = vmatpush.msra.mxu0 %v179
    %197 = vmatpush.msra.mxu0 %v178
    %198 = vmatpush.msra.mxu0 %v177
    %199 = vmatpush.msra.mxu0 %v176
    %200 = vmatpush.msra.mxu0 %v175
    %201 = vmatpush.msra.mxu0 %v174
    %202 = vmatpush.msra.mxu0 %v173
    %203 = vmatpush.msra.mxu0 %v172
    %204 = vmatpush.msra.mxu0 %v171
    %205 = vmatpush.msra.mxu0 %v170
    %206 = vmatmul.f32.gmra.mxu0 %v157
    %v207 = vpop.f32.mrf.mxu0
    %v208 = vadd.f32 %v188, %v207
    %209 = vmatmul.f32.gmra.mxu0 %v158
    %v210 = vpop.f32.mrf.mxu0
    %v211 = vadd.f32 %v188, %v210
    %212 = vmatmul.f32.gmra.mxu0 %v159
    %v213 = vpop.f32.mrf.mxu0
    %v214 = vadd.f32 %v188, %v213
    %215 = vmatmul.f32.gmra.mxu0 %v160
    %v216 = vpop.f32.mrf.mxu0
    %v217 = vadd.f32 %v188, %v216
    %218 = vmatmul.f32.gmra.mxu0 %v161
    %v219 = vpop.f32.mrf.mxu0
    %v220 = vadd.f32 %v188, %v219
    %221 = vmatmul.f32.gmra.mxu0 %v162
    %v222 = vpop.f32.mrf.mxu0
    %v223 = vadd.f32 %v188, %v222
    %224 = vmatmul.f32.gmra.mxu0 %v163
    %v225 = vpop.f32.mrf.mxu0
    %v226 = vadd.f32 %v188, %v225
    %227 = vmatmul.f32.gmra.mxu0 %v164
    %v228 = vpop.f32.mrf.mxu0
    %v229 = vadd.f32 %v188, %v228
    %230 = vmatmul.f32.gmra.mxu0 %v165
    %v231 = vpop.f32.mrf.mxu0
    %v232 = vadd.f32 %v188, %v231
    %233 = vmatmul.f32.gmra.mxu0 %v166
    %v234 = vpop.f32.mrf.mxu0
    %v235 = vadd.f32 %v188, %v234
    %236 = vmatmul.f32.gmra.mxu0 %v167
    %v237 = vpop.f32.mrf.mxu0
    %v238 = vadd.f32 %v188, %v237
    %239 = vmatmul.f32.gmra.mxu0 %v168
    %v240 = vpop.f32.mrf.mxu0
    %v241 = vadd.f32 %v188, %v240
    %242 = vmatmul.f32.gmra.mxu0 %v169
    %v243 = vpop.f32.mrf.mxu0
    %v244 = vadd.f32 %v188, %v243
    %245 = vdwg.mxu0
    %246 = vst [vmem:[#allocation8] sm:$0xff] %v208
    %247 = vst [vmem:[#allocation8 + $0x8] sm:$0xff] %v211
    %248 = vst [vmem:[#allocation8 + $0x10] sm:$0xff] %v214
    %249 = vst [vmem:[#allocation8 + $0x18] sm:$0xff] %v217
    %250 = vst [vmem:[#allocation8 + $0x20] sm:$0xff] %v220
    %251 = vst [vmem:[#allocation8 + $0x28] sm:$0xff] %v223
    %252 = vst [vmem:[#allocation8 + $0x30] sm:$0xff] %v226
    %253 = vst [vmem:[#allocation8 + $0x38] sm:$0xff] %v229
    %254 = vst [vmem:[#allocation8 + $0x40] sm:$0xff] %v232
    %255 = vst [vmem:[#allocation8 + $0x48] sm:$0xff] %v235
    %256 = vst [vmem:[#allocation8 + $0x50] sm:$0xff] %v238
    %257 = vst [vmem:[#allocation8 + $0x58] sm:$0xff] %v241
    %258 = vst [vmem:[#allocation8 + $0x60] sm:$0xff] %v244
    // Predicated region
    $region34: #{tpu_custom_call.1} parent=1 // pred_check
      _
    $region35: #{tpu_custom_call.1} parent=1 // pred_check_branch
      %260 = sbr.rel (0) target = $region37
    $region36: #{tpu_custom_call.1} parent=1 // pred_region
      %262 = vsyncadd [#allocation4], 0
      %s263 = sshll.u32 [#allocation8], 4
      %s264 = int_to_ptr.vmem [resolvable:$true] %s263
      %s265 = sshll.u32 %s5, 4
      %s266 = int_to_ptr.hbm [resolvable:$true] %s265
      %271 = dma.vmem_to_hbm [thread:$0]  %s264, 1664, %s266, [#allocation4], 128, 128, 8
    $region37: #{tpu_custom_call.1} parent=1 // pred_fallthru
      _
    // Predicated region
    $region38: #{tpu_custom_call.1} parent=1 // pred_check
      _
    $region39: #{tpu_custom_call.1} parent=1 // pred_check_branch
      %273 = sbr.rel (0) target = $region41
    $region40: #{tpu_custom_call.1} parent=1 // pred_region
      %275 = dma.done [#allocation4], 1664
    $region41: #{tpu_custom_call.1} parent=1 // pred_fallthru
      _
    %276 = vsyncpa [#allocation3], 1
    %277 = vsyncpa [#allocation6], 1
    %278 = vsyncpa [#allocation4], 1

</llo_original>
